<compile_context>
chip_gen: v7x
topology: tpu7x:2x2x1
jax: 0.10.0
libtpu: 0.0.40
codegen_flags: <defaults>
</compile_context>

<pallas_src>
import functools

import jax
import jax.numpy as jnp
from jax import lax
from jax.experimental import pallas as pl
from jax.experimental.pallas import tpu as pltpu

LANE = 128


def _round_up(x, m):
    return (x + m - 1) // m * m


def _physical_vmem_bytes():
    # Query physical VMEM so the scoped limit never exceeds the device
    # (v7x: 64 MiB/TC vs 128 MiB on v5e/v6e).  The fallback only covers the
    # query itself; it is never used to mask a compile/runtime failure.
    try:
        return int(pltpu.get_tpu_info().vmem_capacity_bytes)
    except Exception:  # conservative default = smallest known per-core VMEM
        return 64 * 1024 * 1024


def ffn_layernorm_kernel(x_ref, w1_ref, b1_ref, w2_ref, b2_ref, o_ref, *, e_valid):
    """One row tile of LayerNorm(relu(x@W1+b1)@W2 + b2 + x)."""
    x = x_ref[...]                                           # (tm, Ep) f32 residual

    # conv1 (1x1) + ReLU == relu(x @ W1 + b1): bf16 MXU inputs, f32 accumulation.
    # Bias add / ReLU stay in f32 (v5e VPU has no bf16 path; better accuracy).
    h = jnp.dot(x.astype(jnp.bfloat16), w1_ref[...],
                preferred_element_type=jnp.float32) + b1_ref[...]
    h = jnp.maximum(h, 0.0)

    # conv2 (1x1) == h @ W2 + b2 ; residual add in f32.
    y = jnp.dot(h.astype(jnp.bfloat16), w2_ref[...],
                preferred_element_type=jnp.float32) + b2_ref[...] + x

    # TODO(synk): dropout is identity (inference semantics / p effectively 0) and
    # the freshly-constructed nn.LayerNorm in the PyTorch forward implies
    # gamma=1, beta=0 (eps=1e-5); train-mode dropout / learned affine not modeled.

    # LayerNorm over the embed dim.  Lane-padding columns of y are provably zero
    # (x, W1 cols, W2 cols, b1, b2 are all zero-padded), so only `centered` needs
    # masking before the variance reduction (single VPU select, and only when
    # padding actually exists).
    ep = y.shape[-1]
    inv_e = 1.0 / e_valid
    mean = jnp.sum(y, axis=-1, keepdims=True) * inv_e
    centered = y - mean
    if ep != e_valid:
        valid = lax.broadcasted_iota(jnp.int32, y.shape, 1) < e_valid
        centered = jnp.where(valid, centered, 0.0)
    var = jnp.sum(centered * centered, axis=-1, keepdims=True) * inv_e
    o_ref[...] = centered * lax.rsqrt(var + 1e-5)


def prepare_ffn_params(w1, b1, w2, b2):
    """One-time weight prep (lane padding + bf16 cast), hoisted out of the
    per-forward path so the constants are never re-padded / re-cast per call."""
    E, d_ff = w1.shape
    Ep = _round_up(E, LANE)
    Fp = _round_up(d_ff, LANE)
    w1p = jnp.pad(w1, ((0, Ep - E), (0, Fp - d_ff))).astype(jnp.bfloat16)
    w2p = jnp.pad(w2, ((0, Fp - d_ff), (0, Ep - E))).astype(jnp.bfloat16)
    b1p = jnp.pad(b1, (0, Fp - d_ff)).reshape(1, Fp).astype(jnp.float32)
    b2p = jnp.pad(b2, (0, Ep - E)).reshape(1, Ep).astype(jnp.float32)
    return w1p, b1p, w2p, b2p


def poswise_ffn(x, params, *, tm=512):
    """x: [B, L, E] float32; params from prepare_ffn_params.
    Returns LayerNorm(conv2(relu(conv1(x))) + x)."""
    w1p, b1p, w2p, b2p = params
    B, L, E = x.shape
    Ep, Fp = w1p.shape
    M = B * L

    # Activations: no row padding (no extra HBM pass); pad lanes only if the
    # embed dim is not already 128-aligned.
    x2d = x.reshape(M, E).astype(jnp.float32)
    if Ep != E:
        x2d = jnp.pad(x2d, ((0, 0), (0, Ep - E)))

    # Itemized VMEM accounting (no extra headroom multiplier):
    #   fixed  : bf16 weights + biases (double-buffered by the default pipeline,
    #            but DMA'd only once since their block index never changes)
    #   per row: x tile + out tile (double-buffered) + f32 h + y/centered temps
    fixed_bytes = 2 * (2 * Ep * Fp * 2) + 2 * 2 * (Fp + Ep) * 4
    per_row_bytes = 2 * Ep * 4 + 2 * Ep * 4 + Fp * 4 + 2 * Ep * 4
    cap = int(0.9 * _physical_vmem_bytes())
    budget = cap - fixed_bytes - (4 << 20)
    tm_max = max(8, (budget // per_row_bytes) // 8 * 8) if budget > 0 else 8
    # Large row tile amortizes the ~0.35us/step grid overhead and lengthens each
    # MXU pass against the resident weights; only the data size and the VMEM
    # budget clamp it (no ">= 2 grid steps" shrinking).
    tm = max(8, (min(tm, tm_max, _round_up(M, 8)) // 8) * 8)
    grid_m = pl.cdiv(M, tm)

    vmem_limit = int(min(max(fixed_bytes + tm * per_row_bytes + (4 << 20),
                             min(32 * 1024 * 1024, cap)), cap))
    # TODO(synk): for very large E*d_ff (resident weights + f32 h exceeding the
    # v7x 64 MiB budget) add an Fp-tiled grid axis ("arbitrary") with an f32
    # accumulator instead of keeping W1/W2 fully resident.

    out2d = pl.pallas_call(
        functools.partial(ffn_layernorm_kernel, e_valid=E),
        out_shape=jax.ShapeDtypeStruct((M, Ep), jnp.float32),
        grid_spec=pltpu.PrefetchScalarGridSpec(
            num_scalar_prefetch=0,
            grid=(grid_m,),
            in_specs=[
                pl.BlockSpec((tm, Ep), lambda i: (i, 0)),   # x rows (streamed)
                pl.BlockSpec((Ep, Fp), lambda i: (0, 0)),   # W1 (resident)
                pl.BlockSpec((1, Fp), lambda i: (0, 0)),    # b1
                pl.BlockSpec((Fp, Ep), lambda i: (0, 0)),   # W2 (resident)
                pl.BlockSpec((1, Ep), lambda i: (0, 0)),    # b2
            ],
            out_specs=pl.BlockSpec((tm, Ep), lambda i: (i, 0)),
        ),
        compiler_params=pltpu.CompilerParams(
            dimension_semantics=("parallel",),
            vmem_limit_bytes=vmem_limit,
        ),
    )(x2d, w1p, b1p, w2p, b2p)

    if Ep != E:
        out2d = out2d[:, :E]
    return out2d.reshape(B, L, E)


def reference(x, w1, b1, w2, b2):
    h = jnp.maximum(jnp.einsum("ble,ef->blf", x, w1) + b1, 0.0)
    y = jnp.einsum("blf,fe->ble", h, w2) + b2 + x
    mean = jnp.mean(y, axis=-1, keepdims=True)
    var = jnp.mean((y - mean) ** 2, axis=-1, keepdims=True)
    return (y - mean) * lax.rsqrt(var + 1e-5)


if __name__ == "__main__":
    B, L, E, d_ff = 2, 8, 32, 64

    key = jax.random.PRNGKey(0)
    kx, k1, k2, k3, k4 = jax.random.split(key, 5)

    x = jax.random.normal(kx, (B, L, E), dtype=jnp.float32)

    # Deterministic param init (mimicking Conv1d's uniform init scale).
    bound1 = 1.0 / (E ** 0.5)
    w1 = jax.random.uniform(k1, (E, d_ff), jnp.float32, -bound1, bound1)
    b1 = jax.random.uniform(k2, (d_ff,), jnp.float32, -bound1, bound1)
    bound2 = 1.0 / (d_ff ** 0.5)
    w2 = jax.random.uniform(k3, (d_ff, E), jnp.float32, -bound2, bound2)
    b2 = jax.random.uniform(k4, (E,), jnp.float32, -bound2, bound2)

    params = prepare_ffn_params(w1, b1, w2, b2)   # one-time weight prep
    out = jax.block_until_ready(poswise_ffn(x, params))
    ref = reference(x, w1, b1, w2, b2)

    assert out.shape == (B, L, E)
    # bf16 matmul inputs (f32 accumulation) => tolerance loosened vs f32 reference.
    err = float(jnp.max(jnp.abs(out - ref)))
    assert jnp.allclose(out, ref, atol=5e-2, rtol=5e-2), err

    print("KERNEL_OK")
</pallas_src>

<mosaic_0001>
module attributes {stable_mosaic.version = 11 : i64} {
  func.func @ffn_layernorm_kernel(%arg0: i32, %arg1: memref<16x128xf32, #tpu.memory_space<vmem>>, %arg2: memref<128x128xbf16, #tpu.memory_space<vmem>>, %arg3: memref<1x128xf32, #tpu.memory_space<vmem>>, %arg4: memref<128x128xbf16, #tpu.memory_space<vmem>>, %arg5: memref<1x128xf32, #tpu.memory_space<vmem>>, %arg6: memref<16x128xf32, #tpu.memory_space<vmem>>) attributes {dimension_semantics = [#tpu.dimension_semantics<parallel>], iteration_bounds = array<i64: 1>, scalar_prefetch = 0 : i64, scratch_operands = 0 : i64, tpu.core_type = #tpu.core_type<tc>, window_params = [{transform_indices = @transform_0, window_bounds = array<i64: 16, 128>}, {pipeline_mode = #tpu.pipeline_mode<synchronous>, transform_indices = @transform_1, window_bounds = array<i64: 128, 128>}, {pipeline_mode = #tpu.pipeline_mode<synchronous>, transform_indices = @transform_2, window_bounds = array<i64: 1, 128>}, {pipeline_mode = #tpu.pipeline_mode<synchronous>, transform_indices = @transform_3, window_bounds = array<i64: 128, 128>}, {pipeline_mode = #tpu.pipeline_mode<synchronous>, transform_indices = @transform_4, window_bounds = array<i64: 1, 128>}, {transform_indices = @transform_5, window_bounds = array<i64: 16, 128>}]} {
    %c0 = arith.constant 0 : index
    %c0_0 = arith.constant 0 : index
    %0 = vector.load %arg1[%c0, %c0_0] : memref<16x128xf32, #tpu.memory_space<vmem>>, vector<16x128xf32>
    %1 = arith.truncf %0 : vector<16x128xf32> to vector<16x128xbf16>
    %c0_1 = arith.constant 0 : index
    %c0_2 = arith.constant 0 : index
    %2 = vector.load %arg2[%c0_1, %c0_2] : memref<128x128xbf16, #tpu.memory_space<vmem>>, vector<128x128xbf16>
    %cst = arith.constant dense<0.000000e+00> : vector<16x128xf32>
    %3 = tpu.matmul %1, %2, %cst {dimension_numbers = #tpu.dot_dimension_numbers<[1], [0], [0], [1], [0, 0, 1, 1], [], []>} : vector<16x128xbf16>, vector<128x128xbf16>, vector<16x128xf32> -> vector<16x128xf32>
    %c0_3 = arith.constant 0 : index
    %c0_4 = arith.constant 0 : index
    %4 = vector.load %arg3[%c0_3, %c0_4] : memref<1x128xf32, #tpu.memory_space<vmem>>, vector<1x128xf32>
    %5 = vector.broadcast %4 : vector<1x128xf32> to vector<16x128xf32>
    %6 = arith.addf %3, %5 : vector<16x128xf32>
    %cst_5 = arith.constant 0.000000e+00 : f32
    %7 = vector.broadcast %cst_5 : f32 to vector<16x128xf32>
    %8 = arith.maximumf %6, %7 : vector<16x128xf32>
    %9 = arith.truncf %8 : vector<16x128xf32> to vector<16x128xbf16>
    %c0_6 = arith.constant 0 : index
    %c0_7 = arith.constant 0 : index
    %10 = vector.load %arg4[%c0_6, %c0_7] : memref<128x128xbf16, #tpu.memory_space<vmem>>, vector<128x128xbf16>
    %cst_8 = arith.constant dense<0.000000e+00> : vector<16x128xf32>
    %11 = tpu.matmul %9, %10, %cst_8 {dimension_numbers = #tpu.dot_dimension_numbers<[1], [0], [0], [1], [0, 0, 1, 1], [], []>} : vector<16x128xbf16>, vector<128x128xbf16>, vector<16x128xf32> -> vector<16x128xf32>
    %c0_9 = arith.constant 0 : index
    %c0_10 = arith.constant 0 : index
    %12 = vector.load %arg5[%c0_9, %c0_10] : memref<1x128xf32, #tpu.memory_space<vmem>>, vector<1x128xf32>
    %13 = vector.broadcast %12 : vector<1x128xf32> to vector<16x128xf32>
    %14 = arith.addf %11, %13 : vector<16x128xf32>
    %15 = arith.addf %14, %0 : vector<16x128xf32>
    %cst_11 = arith.constant dense<0.000000e+00> : vector<16xf32>
    %16 = vector.multi_reduction <add>, %15, %cst_11 [1] : vector<16x128xf32> to vector<16xf32>
    %17 = vector.shape_cast %16 : vector<16xf32> to vector<16x1xf32>
    %cst_12 = arith.constant 3.125000e-02 : f32
    %18 = vector.broadcast %cst_12 : f32 to vector<16x1xf32>
    %19 = arith.mulf %17, %18 : vector<16x1xf32>
    %20 = vector.broadcast %19 : vector<16x1xf32> to vector<16x128xf32>
    %21 = arith.subf %15, %20 : vector<16x128xf32>
    %22 = tpu.iota {dimensions = array<i32: 1>} : vector<16x128xi32>
    %c32_i32 = arith.constant 32 : i32
    %23 = vector.broadcast %c32_i32 : i32 to vector<16x128xi32>
    %24 = arith.cmpi slt, %22, %23 : vector<16x128xi32>
    %cst_13 = arith.constant 0.000000e+00 : f32
    %25 = vector.broadcast %cst_13 : f32 to vector<16x128xf32>
    %26 = arith.select %24, %21, %25 : vector<16x128xi1>, vector<16x128xf32>
    %27 = arith.mulf %26, %26 : vector<16x128xf32>
    %cst_14 = arith.constant dense<0.000000e+00> : vector<16xf32>
    %28 = vector.multi_reduction <add>, %27, %cst_14 [1] : vector<16x128xf32> to vector<16xf32>
    %29 = vector.shape_cast %28 : vector<16xf32> to vector<16x1xf32>
    %cst_15 = arith.constant 3.125000e-02 : f32
    %30 = vector.broadcast %cst_15 : f32 to vector<16x1xf32>
    %31 = arith.mulf %29, %30 : vector<16x1xf32>
    %cst_16 = arith.constant 9.99999974E-6 : f32
    %32 = vector.broadcast %cst_16 : f32 to vector<16x1xf32>
    %33 = arith.addf %31, %32 : vector<16x1xf32>
    %34 = math.rsqrt %33 : vector<16x1xf32>
    %35 = vector.broadcast %34 : vector<16x1xf32> to vector<16x128xf32>
    %36 = arith.mulf %26, %35 : vector<16x128xf32>
    %c0_17 = arith.constant 0 : index
    %c0_18 = arith.constant 0 : index
    %37 = vector.load %arg6[%c0_17, %c0_18] : memref<16x128xf32, #tpu.memory_space<vmem>>, vector<16x128xf32>
    tpu.vector_store %arg6[%c0_17, %c0_18], %36 {strides = array<i32>} : memref<16x128xf32, #tpu.memory_space<vmem>>, vector<16x128xf32>,
    return
  }
  func.func @transform_0(%arg0: i32) -> (i32, i32) {
    %c0_i32 = arith.constant 0 : i32
    %c0_i32_0 = arith.constant 0 : i32
    return %arg0, %c0_i32 : i32, i32
  }
  func.func @transform_1(%arg0: i32) -> (i32, i32) {
    %c0_i32 = arith.constant 0 : i32
    %c0_i32_0 = arith.constant 0 : i32
    %c0_i32_1 = arith.constant 0 : i32
    return %c0_i32, %c0_i32_0 : i32, i32
  }
  func.func @transform_2(%arg0: i32) -> (i32, i32) {
    %c0_i32 = arith.constant 0 : i32
    %c0_i32_0 = arith.constant 0 : i32
    %c0_i32_1 = arith.constant 0 : i32
    return %c0_i32, %c0_i32_0 : i32, i32
  }
  func.func @transform_3(%arg0: i32) -> (i32, i32) {
    %c0_i32 = arith.constant 0 : i32
    %c0_i32_0 = arith.constant 0 : i32
    %c0_i32_1 = arith.constant 0 : i32
    return %c0_i32, %c0_i32_0 : i32, i32
  }
  func.func @transform_4(%arg0: i32) -> (i32, i32) {
    %c0_i32 = arith.constant 0 : i32
    %c0_i32_0 = arith.constant 0 : i32
    %c0_i32_1 = arith.constant 0 : i32
    return %c0_i32, %c0_i32_0 : i32, i32
  }
  func.func @transform_5(%arg0: i32) -> (i32, i32) {
    %c0_i32 = arith.constant 0 : i32
    %c0_i32_0 = arith.constant 0 : i32
    return %arg0, %c0_i32 : i32, i32
  }
}

</mosaic_0001>

<llo_original>
// kernel: tpu_custom_call.1
$region0: #{tpu_custom_call.1}
  #allocation0 [shape = 'u32[]', space=smem, size = 0x4, offset = 0x4, fixed_abs, tag = 'smem constant byte address 0x4 - core index']
  #allocation1 [shape = 'u32[144,128]{1,0:T(1,128)}', space=vmem, size = 0x12000, scoped, tag = 'internal scratch']
  %s0 = inlined_call_operand.hbm [shape: f32[16,128], index: 0, kind: input, shape index: {}]
  %s1 = inlined_call_operand.hbm [shape: bf16[128,128], index: 1, kind: input, shape index: {}]
  %s2 = inlined_call_operand.vmem [shape: f32[1,128], index: 2, kind: input, shape index: {}]
  %s3 = inlined_call_operand.hbm [shape: bf16[128,128], index: 3, kind: input, shape index: {}]
  %s4 = inlined_call_operand.vmem [shape: f32[1,128], index: 4, kind: input, shape index: {}]
  %s5 = inlined_call_operand.hbm [shape: f32[16,128], index: 5, kind: output, shape index: {}]
  %s6 = sld [smem:[#allocation0]]
  $region42: #{tpu_custom_call.1} parent=0
    _
  %s8 = ssub.s32 1, %s6
  %s9 = scalar_select 0, %s8, %s6
  $region1: #{tpu_custom_call.1} parent=0
    #allocation2 [shape = 'u8[8192]{0}', space=vmem, size = 0x2000, scoped, tag = 'input window, operand 0, single buffered']
    #allocation3 [shape = 's32[1]{0}', space=sflag, size = 0x4, scoped, tag = 'scoped memory for tpu_custom_call.1']
    #allocation4 [shape = 's32[1]{0}', space=sflag, size = 0x4, scoped, tag = 'scoped memory for tpu_custom_call.1']
    #allocation5 [shape = 'u8[32768]{0}', space=vmem, size = 0x8000, scoped, tag = 'input window, operand 1, single buffered']
    #allocation6 [shape = 's32[1]{0}', space=sflag, size = 0x4, scoped, tag = 'scoped memory for tpu_custom_call.1']
    #allocation7 [shape = 'u8[32768]{0}', space=vmem, size = 0x8000, scoped, tag = 'input window, operand 3, single buffered']
    #allocation8 [shape = 'u8[8192]{0}', space=vmem, size = 0x2000, scoped, tag = 'output window, operand 0, single buffered']
    %10 = vsyncpa [#allocation3], 0
    %11 = vsyncpa [#allocation6], 0
    %12 = vsyncpa [#allocation4], 0
    // Predicated region
    $region2: #{tpu_custom_call.1} parent=1 // pred_check
      _
    $region3: #{tpu_custom_call.1} parent=1 // pred_check_branch
      %14 = sbr.rel (0) target = $region5
    $region4: #{tpu_custom_call.1} parent=1 // pred_region
      %s16 = ssub.s32 256, 256
      %17 = vsyncadd [#allocation3], %s16
      %s18 = sshll.u32 [#allocation2], 4
      %s19 = int_to_ptr.vmem [resolvable:$true] %s18
      %24 = dma.hbm_to_vmem [thread:$0]  %s0, 256, %s19, [#allocation3], 128, 128, 8
    $region5: #{tpu_custom_call.1} parent=1 // pred_fallthru
      _
    // Predicated region
    $region6: #{tpu_custom_call.1} parent=1 // pred_check
      _
    $region7: #{tpu_custom_call.1} parent=1 // pred_check_branch
      %26 = sbr.rel (0) target = $region9
    $region8: #{tpu_custom_call.1} parent=1 // pred_region
      %s28 = ssub.s32 1024, 1024
      %29 = vsyncadd [#allocation6], %s28
      %s30 = sshll.u32 [#allocation5], 4
      %s31 = int_to_ptr.vmem [resolvable:$true] %s30
      %36 = dma.hbm_to_vmem [thread:$0]  %s1, 1024, %s31, [#allocation6], 64, 64, 4
    $region9: #{tpu_custom_call.1} parent=1 // pred_fallthru
      _
    // Predicated region
    $region10: #{tpu_custom_call.1} parent=1 // pred_check
      _
    $region11: #{tpu_custom_call.1} parent=1 // pred_check_branch
      %38 = sbr.rel (0) target = $region13
    $region12: #{tpu_custom_call.1} parent=1 // pred_region
      _
    $region13: #{tpu_custom_call.1} parent=1 // pred_fallthru
      _
    // Predicated region
    $region14: #{tpu_custom_call.1} parent=1 // pred_check
      _
    $region15: #{tpu_custom_call.1} parent=1 // pred_check_branch
      %40 = sbr.rel (0) target = $region17
    $region16: #{tpu_custom_call.1} parent=1 // pred_region
      %s42 = ssub.s32 1024, 1024
      %43 = vsyncadd [#allocation6], %s42
      %s44 = sshll.u32 [#allocation7], 4
      %s45 = int_to_ptr.vmem [resolvable:$true] %s44
      %50 = dma.hbm_to_vmem [thread:$0]  %s3, 1024, %s45, [#allocation6], 64, 64, 4
    $region17: #{tpu_custom_call.1} parent=1 // pred_fallthru
      _
    // Predicated region
    $region18: #{tpu_custom_call.1} parent=1 // pred_check
      _
    $region19: #{tpu_custom_call.1} parent=1 // pred_check_branch
      %52 = sbr.rel (0) target = $region21
    $region20: #{tpu_custom_call.1} parent=1 // pred_region
      _
    $region21: #{tpu_custom_call.1} parent=1 // pred_fallthru
      _
    // Predicated region
    $region22: #{tpu_custom_call.1} parent=1 // pred_check
      _
    $region23: #{tpu_custom_call.1} parent=1 // pred_check_branch
      %54 = sbr.rel (0) target = $region25
    $region24: #{tpu_custom_call.1} parent=1 // pred_region
      %55 = dma.done [#allocation3], 256
    $region25: #{tpu_custom_call.1} parent=1 // pred_fallthru
      _
    // Predicated region
    $region26: #{tpu_custom_call.1} parent=1 // pred_check
      _
    $region27: #{tpu_custom_call.1} parent=1 // pred_check_branch
      %57 = sbr.rel (0) target = $region29
    $region28: #{tpu_custom_call.1} parent=1 // pred_region
      %58 = dma.done [#allocation6], 1024
    $region29: #{tpu_custom_call.1} parent=1 // pred_fallthru
      _
    // Predicated region
    $region30: #{tpu_custom_call.1} parent=1 // pred_check
      _
    $region31: #{tpu_custom_call.1} parent=1 // pred_check_branch
      %60 = sbr.rel (0) target = $region33
    $region32: #{tpu_custom_call.1} parent=1 // pred_region
      %61 = dma.done [#allocation6], 1024
    $region33: #{tpu_custom_call.1} parent=1 // pred_fallthru
      _
    %v63 = vld [vmem:[#allocation2] sm:$0xff]
    %v64 = vld [vmem:[#allocation2 + $0x8] sm:$0xff]
    %v65 = vpack.c.bf16 %v64, %v63
    %v66 = vld [vmem:[#allocation5] sm:$0xf]
    %v67 = vld [vmem:[#allocation5 + $0x4] sm:$0xf]
    %v68 = vld [vmem:[#allocation5 + $0x8] sm:$0xf]
    %v69 = vld [vmem:[#allocation5 + $0xc] sm:$0xf]
    %v70 = vld [vmem:[#allocation5 + $0x10] sm:$0xf]
    %v71 = vld [vmem:[#allocation5 + $0x14] sm:$0xf]
    %v72 = vld [vmem:[#allocation5 + $0x18] sm:$0xf]
    %v73 = vld [vmem:[#allocation5 + $0x1c] sm:$0xf]
    %v74 = vld [vmem:[#allocation5 + $0x20] sm:$0xf]
    %v75 = vld [vmem:[#allocation5 + $0x24] sm:$0xf]
    %v76 = vld [vmem:[#allocation5 + $0x28] sm:$0xf]
    %v77 = vld [vmem:[#allocation5 + $0x2c] sm:$0xf]
    %v78 = vld [vmem:[#allocation5 + $0x30] sm:$0xf]
    %v79 = vld [vmem:[#allocation5 + $0x34] sm:$0xf]
    %v80 = vld [vmem:[#allocation5 + $0x38] sm:$0xf]
    %v81 = vld [vmem:[#allocation5 + $0x3c] sm:$0xf]
    %v82 = vld [vmem:[%s2] sm:$0x1]
    %v84 = vlaneseq
    %v85 = vshrl.u32 %v84, 7
    %v86 = vsub.s32 0, %v85
    %v87 = vrot.slane %v82, %v86
    %v105 = vunpack.c.l.b16 %v66
    %v106 = vunpack.c.l.b16 %v67
    %v107 = vunpack.c.l.b16 %v68
    %v108 = vunpack.c.l.b16 %v69
    %v109 = vunpack.c.l.b16 %v70
    %v110 = vunpack.c.l.b16 %v71
    %v111 = vunpack.c.l.b16 %v72
    %v112 = vunpack.c.l.b16 %v73
    %v113 = vunpack.c.l.b16 %v74
    %v114 = vunpack.c.l.b16 %v75
    %v115 = vunpack.c.l.b16 %v76
    %v116 = vunpack.c.l.b16 %v77
    %v117 = vunpack.c.l.b16 %v78
    %v118 = vunpack.c.l.b16 %v79
    %v119 = vunpack.c.l.b16 %v80
    %v120 = vunpack.c.l.b16 %v81
    %v121 = vpack.c.b16 %v106, %v105
    %v122 = vpack.c.b16 %v108, %v107
    %v123 = vpack.c.b16 %v110, %v109
    %v124 = vpack.c.b16 %v112, %v111
    %v125 = vpack.c.b16 %v114, %v113
    %v126 = vpack.c.b16 %v116, %v115
    %v127 = vpack.c.b16 %v118, %v117
    %v128 = vpack.c.b16 %v120, %v119
    %137 = vmatprep.subr.bf16.mxu0 0
    %138 = vmatpush1.bf16.msra.mxu0 %v121
    %139 = vmatprep.subr.bf16.mxu0 0
    %140 = vmatpush1.bf16.msra.mxu0 %v122
    %141 = vmatprep.subr.bf16.mxu0 0
    %142 = vmatpush1.bf16.msra.mxu0 %v123
    %143 = vmatprep.subr.bf16.mxu0 0
    %144 = vmatpush1.bf16.msra.mxu0 %v124
    %145 = vmatprep.subr.bf16.mxu0 0
    %146 = vmatpush1.bf16.msra.mxu0 %v125
    %147 = vmatprep.subr.bf16.mxu0 0
    %148 = vmatpush1.bf16.msra.mxu0 %v126
    %149 = vmatprep.subr.bf16.mxu0 0
    %150 = vmatpush1.bf16.msra.mxu0 %v127
    %151 = vmatprep.subr.bf16.mxu0 0
    %152 = vmatpush1.bf16.msra.mxu0 %v128
    %153 = vmatprep.subr.bf16.mxu0 0
    %154 = vmatpush1.bf16.msra.mxu0 0
    %155 = vmatprep.subr.bf16.mxu0 0
    %156 = vmatpush1.bf16.msra.mxu0 0
    %157 = vmatprep.subr.bf16.mxu0 0
    %158 = vmatpush1.bf16.msra.mxu0 0
    %159 = vmatprep.subr.bf16.mxu0 0
    %160 = vmatpush1.bf16.msra.mxu0 0
    %161 = vmatprep.subr.bf16.mxu0 0
    %162 = vmatpush1.bf16.msra.mxu0 0
    %163 = vmatprep.subr.bf16.mxu0 0
    %164 = vmatpush1.bf16.msra.mxu0 0
    %165 = vmatprep.subr.bf16.mxu0 0
    %166 = vmatpush1.bf16.msra.mxu0 0
    %167 = vmatprep.subr.bf16.mxu0 0
    %168 = vmatpush1.bf16.msra.mxu0 0
    %169 = vmatprep.mubr.bf16.mxu0 0
    %170 = vmatmul.mubr.bf16.gmra.mrb[0].mxu0 %v65
    %v171 = vpop.f32.mrb[0].mxu0
    %v172 = vadd.f32 %v87, %v171
    %v173 = vpop.f32.mrb[0].mxu0
    %v174 = vpop.f32.mrb[0].mxu0
    %v175 = vadd.f32 %v87, %v174
    %v176 = vpop.f32.mrb[0].mxu0
    %177 = vdwg.mxu0
    %v178 = vmax.f32 %v172, 0.0
    %v179 = vmax.f32 %v175, 0.0
    %v180 = vpack.c.bf16 %v179, %v178
    %v181 = vld [vmem:[#allocation7] sm:$0xf]
    %v182 = vld [vmem:[#allocation7 + $0x4] sm:$0xf]
    %v183 = vld [vmem:[#allocation7 + $0x8] sm:$0xf]
    %v184 = vld [vmem:[#allocation7 + $0xc] sm:$0xf]
    %v185 = vld [vmem:[#allocation7 + $0x10] sm:$0xf]
    %v186 = vld [vmem:[#allocation7 + $0x14] sm:$0xf]
    %v187 = vld [vmem:[#allocation7 + $0x18] sm:$0xf]
    %v188 = vld [vmem:[#allocation7 + $0x1c] sm:$0xf]
    %v189 = vld [vmem:[#allocation7 + $0x20] sm:$0xf]
    %v190 = vld [vmem:[#allocation7 + $0x24] sm:$0xf]
    %v191 = vld [vmem:[#allocation7 + $0x28] sm:$0xf]
    %v192 = vld [vmem:[#allocation7 + $0x2c] sm:$0xf]
    %v193 = vld [vmem:[#allocation7 + $0x30] sm:$0xf]
    %v194 = vld [vmem:[#allocation7 + $0x34] sm:$0xf]
    %v195 = vld [vmem:[#allocation7 + $0x38] sm:$0xf]
    %v196 = vld [vmem:[#allocation7 + $0x3c] sm:$0xf]
    %v197 = vld [vmem:[%s4] sm:$0x1]
    %v199 = vlaneseq
    %v200 = vshrl.u32 %v199, 7
    %v201 = vsub.s32 0, %v200
    %v202 = vrot.slane %v197, %v201
    %v220 = vunpack.c.l.b16 %v181
    %v221 = vunpack.c.l.b16 %v182
    %v222 = vunpack.c.l.b16 %v183
    %v223 = vunpack.c.l.b16 %v184
    %v224 = vunpack.c.l.b16 %v185
    %v225 = vunpack.c.l.b16 %v186
    %v226 = vunpack.c.l.b16 %v187
    %v227 = vunpack.c.l.b16 %v188
    %v228 = vunpack.c.l.b16 %v189
    %v229 = vunpack.c.l.b16 %v190
    %v230 = vunpack.c.l.b16 %v191
    %v231 = vunpack.c.l.b16 %v192
    %v232 = vunpack.c.l.b16 %v193
    %v233 = vunpack.c.l.b16 %v194
    %v234 = vunpack.c.l.b16 %v195
    %v235 = vunpack.c.l.b16 %v196
    %v236 = vpack.c.b16 %v221, %v220
    %v237 = vpack.c.b16 %v223, %v222
    %v238 = vpack.c.b16 %v225, %v224
    %v239 = vpack.c.b16 %v227, %v226
    %v240 = vpack.c.b16 %v229, %v228
    %v241 = vpack.c.b16 %v231, %v230
    %v242 = vpack.c.b16 %v233, %v232
    %v243 = vpack.c.b16 %v235, %v234
    %252 = vmatprep.subr.bf16.mxu0 0
    %253 = vmatpush1.bf16.msra.mxu0 %v236
    %254 = vmatprep.subr.bf16.mxu0 0
    %255 = vmatpush1.bf16.msra.mxu0 %v237
    %256 = vmatprep.subr.bf16.mxu0 0
    %257 = vmatpush1.bf16.msra.mxu0 %v238
    %258 = vmatprep.subr.bf16.mxu0 0
    %259 = vmatpush1.bf16.msra.mxu0 %v239
    %260 = vmatprep.subr.bf16.mxu0 0
    %261 = vmatpush1.bf16.msra.mxu0 %v240
    %262 = vmatprep.subr.bf16.mxu0 0
    %263 = vmatpush1.bf16.msra.mxu0 %v241
    %264 = vmatprep.subr.bf16.mxu0 0
    %265 = vmatpush1.bf16.msra.mxu0 %v242
    %266 = vmatprep.subr.bf16.mxu0 0
    %267 = vmatpush1.bf16.msra.mxu0 %v243
    %268 = vmatprep.subr.bf16.mxu0 0
    %269 = vmatpush1.bf16.msra.mxu0 0
    %270 = vmatprep.subr.bf16.mxu0 0
    %271 = vmatpush1.bf16.msra.mxu0 0
    %272 = vmatprep.subr.bf16.mxu0 0
    %273 = vmatpush1.bf16.msra.mxu0 0
    %274 = vmatprep.subr.bf16.mxu0 0
    %275 = vmatpush1.bf16.msra.mxu0 0
    %276 = vmatprep.subr.bf16.mxu0 0
    %277 = vmatpush1.bf16.msra.mxu0 0
    %278 = vmatprep.subr.bf16.mxu0 0
    %279 = vmatpush1.bf16.msra.mxu0 0
    %280 = vmatprep.subr.bf16.mxu0 0
    %281 = vmatpush1.bf16.msra.mxu0 0
    %282 = vmatprep.subr.bf16.mxu0 0
    %283 = vmatpush1.bf16.msra.mxu0 0
    %284 = vmatprep.mubr.bf16.mxu0 0
    %285 = vmatmul.mubr.bf16.gmra.mrb[0].mxu0 %v180
    %v286 = vpop.f32.mrb[0].mxu0
    %v287 = vadd.f32 %v202, %v286
    %v288 = vpop.f32.mrb[0].mxu0
    %v289 = vpop.f32.mrb[0].mxu0
    %v290 = vadd.f32 %v202, %v289
    %v291 = vpop.f32.mrb[0].mxu0
    %292 = vdwg.mxu0
    %v293 = vadd.f32 %v287, %v63
    %v294 = vadd.f32 %v290, %v64
    %295 = vadd.xlane.f32.xlu0 %v293
    %v296 = vpop.xlane.xlu0 %295
    %297 = vadd.xlane.f32.xlu0 %v294
    %v298 = vpop.xlane.xlu0 %297
    %v299 = vmul.f32 %v296, 0.03125
    %v300 = vmul.f32 %v298, 0.03125
    %v301 = vsub.f32 %v293, %v299
    %v302 = vsub.f32 %v294, %v300
    %v303 = vlaneseq
    %v304 = vand.u32 %v303, 127
    %vm305 = vcmp.lt.s32.totalorder %v304, 32
    %v306 = vsel %vm305, %v301, 0.0
    %v307 = vsel %vm305, %v302, 0.0
    %v308 = vmul.f32 %v306, %v306
    %v309 = vmul.f32 %v307, %v307
    %310 = vadd.xlane.f32.xlu0 %v308
    %v311 = vpop.xlane.xlu0 %310
    %312 = vadd.xlane.f32.xlu0 %v309
    %v313 = vpop.xlane.xlu0 %312
    %v314 = vmul.f32 %v311, 0.03125
    %v315 = vmul.f32 %v313, 0.03125
    %v316 = vadd.f32 %v314, 1e-05
    %v317 = vadd.f32 %v315, 1e-05
    %v318 = vrsqrt.pop %v316
    %v319 = vrsqrt.pop %v317
    %v320 = vmul.f32 %v306, %v318
    %v321 = vmul.f32 %v307, %v319
    %322 = vst [vmem:[#allocation8] sm:$0xff] %v320
    %323 = vst [vmem:[#allocation8 + $0x8] sm:$0xff] %v321
    // Predicated region
    $region34: #{tpu_custom_call.1} parent=1 // pred_check
      _
    $region35: #{tpu_custom_call.1} parent=1 // pred_check_branch
      %325 = sbr.rel (0) target = $region37
    $region36: #{tpu_custom_call.1} parent=1 // pred_region
      %s327 = ssub.s32 256, 256
      %328 = vsyncadd [#allocation4], %s327
      %s329 = sshll.u32 [#allocation8], 4
      %s330 = int_to_ptr.vmem [resolvable:$true] %s329
      %335 = dma.vmem_to_hbm [thread:$0]  %s330, 256, %s5, [#allocation4], 128, 128, 8
    $region37: #{tpu_custom_call.1} parent=1 // pred_fallthru
      _
    // Predicated region
    $region38: #{tpu_custom_call.1} parent=1 // pred_check
      _
    $region39: #{tpu_custom_call.1} parent=1 // pred_check_branch
      %337 = sbr.rel (0) target = $region41
    $region40: #{tpu_custom_call.1} parent=1 // pred_region
      %338 = dma.done [#allocation4], 256
    $region41: #{tpu_custom_call.1} parent=1 // pred_fallthru
      _
    %339 = vsyncpa [#allocation3], 1
    %340 = vsyncpa [#allocation6], 1
    %341 = vsyncpa [#allocation4], 1

</llo_original>
